<compile_context>
chip_gen: v5e
topology: v5e:2x2
jax: 0.10.0
libtpu: 0.0.40
codegen_flags: <defaults>
</compile_context>

<pallas_src>
import jax
import jax.numpy as jnp
from jax import lax
from jax.experimental import pallas as pl
from jax.experimental.pallas import tpu as pltpu


_EPI_CHUNK = 256  # rows per layer-1/epilogue chunk inside the kernel


def _round_up(n, m):
    return ((n + m - 1) // m) * m


def _make_mlp_head_kernel(n_chunks, chunk_rows):
    """Fused Linear -> ReLU -> (Dropout=identity) -> Linear for one batch tile.

    x_ref : (TM, D_in)   VMEM (f32 or bf16), streamed per grid step
    w1_ref: (D_in, H)    VMEM (same dtype as x), resident across grid steps
    bw_ref: (2, H)       VMEM f32, resident. Row 0 = b1, row 1 = W2 as a row.
    b2_ref: (1, 1)       SMEM f32 scalar
    o_ref : (TM, 1)      VMEM f32
    """

    def kernel(x_ref, w1_ref, bw_ref, b2_ref, o_ref):
        bw = bw_ref[...]           # tiny (2, H) f32 load
        b1 = bw[0:1, :]
        w2 = bw[1:2, :]
        b2 = b2_ref[0, 0]

        def compute(r0, rows):
            # Layer 1 on the MXU; always accumulate in f32.
            xc = x_ref[pl.ds(r0, rows), :]
            h = jnp.dot(xc, w1_ref[...], preferred_element_type=jnp.float32)
            h = jnp.maximum(h + b1, 0.0)
            # TODO(synk): training-mode dropout (mask via pltpu.prng_random_bits)
            # is intentionally omitted; Dropout is identity at inference.
            # Layer 2: (rows, H) @ (H, 1) is a degenerate 1-column MXU matmul,
            # so do it as a VPU broadcast-multiply + lane reduction instead.
            out = jnp.sum(h * w2, axis=-1, keepdims=True) + b2
            o_ref[pl.ds(r0, rows), :] = out.astype(o_ref.dtype)

        if n_chunks == 1:
            compute(0, chunk_rows)
        else:
            # Chunk the batch tile so the (chunk_rows, H) f32 intermediate
            # stays (mostly) in vregs instead of round-tripping through VMEM.
            def body(c, carry):
                r0 = pl.multiple_of(c * chunk_rows, chunk_rows)
                compute(r0, chunk_rows)
                return carry

            lax.fori_loop(0, n_chunks, body, 0, unroll=True)

    return kernel


def pat_depression_head_forward(x, w1, b1, w2, b2, *, tile_batch=4096):
    """Fused MLP head.

    x : (B, input_dim) float32 or bfloat16 embeddings. No wrapper-side cast:
        feed bf16 only if the producer already emits bf16 (halves the dominant
        HBM stream; logits then differ from f32 at the ~1e-2 level).
    w1: (input_dim, hidden) ; b1: (hidden,) or (1, hidden)
    w2: (hidden, 1) or (hidden,) ; b2: scalar-shaped
    Returns logits (B, 1) float32.
    """
    batch, d_in = x.shape
    hidden = w1.shape[1]

    # Stack b1 and the layer-2 weight row into a single resident f32 input.
    b1 = jnp.asarray(b1, jnp.float32).reshape(1, hidden)
    w2_row = jnp.asarray(w2, jnp.float32).reshape(1, hidden)
    bw = jnp.concatenate([b1, w2_row], axis=0)            # (2, hidden)
    b2 = jnp.asarray(b2, jnp.float32).reshape(1, 1)

    if x.dtype == jnp.bfloat16:
        w1 = w1.astype(jnp.bfloat16)   # resident weight: casting it is cheap
    else:
        x = x.astype(jnp.float32)
        w1 = w1.astype(jnp.float32)

    itemsize = jnp.dtype(x.dtype).itemsize
    sublane = 16 if x.dtype == jnp.bfloat16 else 8

    # Batch tile: big enough to amortize per-grid-step overhead, but capped so
    # the grid has >= 2 steps (lets v7x shard the "parallel" axis over both
    # TensorCores). When tm >= the epilogue chunk, keep it a multiple of it.
    tile_batch = max(int(tile_batch), sublane)
    if batch <= sublane:
        tm = batch                      # block == full array, always legal
    else:
        half = _round_up(pl.cdiv(batch, 2), sublane)
        tm = max(sublane, min(tile_batch, half))
        if tm >= _EPI_CHUNK:
            tm = _round_up(tm, _EPI_CHUNK)
    chunk_rows = min(tm, _EPI_CHUNK)
    n_chunks = tm // chunk_rows
    grid = (pl.cdiv(batch, tm),)        # ragged last block: no jnp.pad copy

    cost = pl.CostEstimate(
        flops=int(2 * batch * d_in * hidden + 3 * batch * hidden),
        transcendentals=0,
        bytes_accessed=int(
            batch * d_in * itemsize            # stream x exactly once
            + w1.size * itemsize               # weights (resident)
            + bw.size * 4 + 4                  # b1/w2 row + b2 scalar
            + batch * 4                        # logits out
        ),
    )

    # Approx VMEM footprint (double-buffered streams + resident weights +
    # epilogue intermediate). Only override the scoped-VMEM limit if a caller
    # picks a tile big enough to need it (not the case at the 4096 default).
    vmem_bytes = (2 * tm * d_in * itemsize
                  + 2 * tm * 4
                  + 2 * (w1.size * itemsize + bw.size * 4)
                  + chunk_rows * hidden * 4)
    vmem_limit = None
    if vmem_bytes > 12 * 1024 * 1024:
        vmem_limit = min(int(vmem_bytes * 2), 100 * 1024 * 1024)

    out = pl.pallas_call(
        _make_mlp_head_kernel(n_chunks, chunk_rows),
        out_shape=jax.ShapeDtypeStruct((batch, 1), jnp.float32),
        grid=grid,
        in_specs=[
            pl.BlockSpec((tm, d_in), lambda i: (i, 0)),        # x: streamed tiles
            pl.BlockSpec((d_in, hidden), lambda i: (0, 0)),    # w1: resident
            pl.BlockSpec((2, hidden), lambda i: (0, 0)),       # [b1; w2]: resident
            pl.BlockSpec(memory_space=pltpu.MemorySpace.SMEM),  # b2 scalar
        ],
        out_specs=pl.BlockSpec((tm, 1), lambda i: (i, 0)),
        compiler_params=pltpu.CompilerParams(
            dimension_semantics=("parallel",),
            vmem_limit_bytes=vmem_limit),
        cost_estimate=cost,
    )(x, w1, bw, b2)
    return out


def init_params(key, input_dim=96, hidden_dim=256):
    """Deterministic synthetic init matching nn.Linear fan-in scaling.

    Weights are stored (in_features, out_features) for the kernel.
    """
    k1, k2, k3, k4 = jax.random.split(key, 4)
    s1 = 1.0 / jnp.sqrt(jnp.float32(input_dim))
    s2 = 1.0 / jnp.sqrt(jnp.float32(hidden_dim))
    w1 = jax.random.uniform(k1, (input_dim, hidden_dim), jnp.float32, -s1, s1)
    b1 = jax.random.uniform(k2, (hidden_dim,), jnp.float32, -s1, s1)
    w2 = jax.random.uniform(k3, (hidden_dim, 1), jnp.float32, -s2, s2)
    b2 = jax.random.uniform(k4, (1,), jnp.float32, -s2, s2)
    return w1, b1, w2, b2


if __name__ == "__main__":
    key = jax.random.PRNGKey(0)
    k_params, k_x1, k_x2, k_x3 = jax.random.split(key, 4)

    input_dim, hidden_dim = 96, 256
    w1, b1, w2, b2 = init_params(k_params, input_dim, hidden_dim)

    def ref_forward(x):
        # Eval-mode PyTorch semantics: Dropout is identity.
        return jnp.maximum(x.astype(jnp.float32) @ w1 + b1, 0.0) @ w2 + b2

    # Small-batch path (single tile, block == full array). PAT embeddings are (B, 96).
    x_small = jax.random.normal(k_x1, (2, input_dim), jnp.float32)
    logits = jax.block_until_ready(
        pat_depression_head_forward(x_small, w1, b1, w2, b2))
    assert logits.shape == (2, 1)
    assert jnp.allclose(logits, ref_forward(x_small), atol=1e-4, rtol=1e-4)

    # Ragged multi-tile grid path: no wrapper-side padding of x.
    x_mid = jax.random.normal(k_x2, (300, input_dim), jnp.float32)
    logits_mid = jax.block_until_ready(
        pat_depression_head_forward(x_mid, w1, b1, w2, b2, tile_batch=128))
    assert logits_mid.shape == (300, 1)
    assert jnp.allclose(logits_mid, ref_forward(x_mid), atol=1e-4, rtol=1e-4)

    # Default tile_batch: exercises the >=2-tile megacore cap, the chunked
    # epilogue (tm=512 -> 2 chunks of 256 rows), and a ragged last tile.
    x_big = jax.random.normal(k_x3, (600, input_dim), jnp.float32)
    logits_big = jax.block_until_ready(
        pat_depression_head_forward(x_big, w1, b1, w2, b2))
    assert logits_big.shape == (600, 1)
    assert jnp.allclose(logits_big, ref_forward(x_big), atol=1e-4, rtol=1e-4)

    # bf16 embeddings produced upstream (no wrapper cast of x; f32 accumulate):
    # loose tolerance vs the f32 reference.
    x_bf16 = x_mid.astype(jnp.bfloat16)
    logits_bf = jax.block_until_ready(
        pat_depression_head_forward(x_bf16, w1, b1, w2, b2, tile_batch=128))
    assert logits_bf.shape == (300, 1)
    assert jnp.allclose(logits_bf, ref_forward(x_mid), atol=3e-2, rtol=3e-2)

    print("KERNEL_OK")
</pallas_src>

<mosaic_0001>
module attributes {stable_mosaic.version = 11 : i64} {
  func.func @kernel(%arg0: i32, %arg1: memref<2x96xf32, #tpu.memory_space<vmem>>, %arg2: memref<96x256xf32, #tpu.memory_space<vmem>>, %arg3: memref<2x256xf32, #tpu.memory_space<vmem>>, %arg4: memref<1x1xf32, #tpu.memory_space<smem>>, %arg5: memref<2x1xf32, #tpu.memory_space<vmem>>) attributes {dimension_semantics = [#tpu.dimension_semantics<parallel>], iteration_bounds = array<i64: 1>, scalar_prefetch = 0 : i64, scratch_operands = 0 : i64, tpu.core_type = #tpu.core_type<tc>, window_params = [{transform_indices = @transform_0, window_bounds = array<i64: 2, 96>}, {pipeline_mode = #tpu.pipeline_mode<synchronous>, transform_indices = @transform_1, window_bounds = array<i64: 96, 256>}, {pipeline_mode = #tpu.pipeline_mode<synchronous>, transform_indices = @transform_2, window_bounds = array<i64: 2, 256>}, {transform_indices = @transform_3, window_bounds = array<i64: 1, 1>}, {transform_indices = @transform_4, window_bounds = array<i64: 2, 1>}]} {
    %c0 = arith.constant 0 : index
    %c0_0 = arith.constant 0 : index
    %0 = vector.load %arg3[%c0, %c0_0] : memref<2x256xf32, #tpu.memory_space<vmem>>, vector<2x256xf32>
    %1 = vector.extract_strided_slice %0 {offsets = [0, 0], sizes = [1, 256], strides = [1, 1]} : vector<2x256xf32> to vector<1x256xf32>
    %2 = vector.extract_strided_slice %0 {offsets = [1, 0], sizes = [1, 256], strides = [1, 1]} : vector<2x256xf32> to vector<1x256xf32>
    %c0_1 = arith.constant 0 : index
    %c0_2 = arith.constant 0 : index
    %3 = memref.load %arg4[%c0_1, %c0_2] : memref<1x1xf32, #tpu.memory_space<smem>>
    %c0_3 = arith.constant 0 : index
    %c0_4 = arith.constant 0 : index
    %4 = vector.load %arg1[%c0_3, %c0_4] : memref<2x96xf32, #tpu.memory_space<vmem>>, vector<2x96xf32>
    %c0_5 = arith.constant 0 : index
    %c0_6 = arith.constant 0 : index
    %5 = vector.load %arg2[%c0_5, %c0_6] : memref<96x256xf32, #tpu.memory_space<vmem>>, vector<96x256xf32>
    %cst = arith.constant dense<0.000000e+00> : vector<2x256xf32>
    %6 = tpu.matmul %4, %5, %cst {dimension_numbers = #tpu.dot_dimension_numbers<[1], [0], [0], [1], [0, 0, 1, 1], [], []>} : vector<2x96xf32>, vector<96x256xf32>, vector<2x256xf32> -> vector<2x256xf32>
    %7 = vector.broadcast %1 : vector<1x256xf32> to vector<2x256xf32>
    %8 = arith.addf %6, %7 : vector<2x256xf32>
    %cst_7 = arith.constant 0.000000e+00 : f32
    %9 = vector.broadcast %cst_7 : f32 to vector<2x256xf32>
    %10 = arith.maximumf %8, %9 : vector<2x256xf32>
    %11 = vector.broadcast %2 : vector<1x256xf32> to vector<2x256xf32>
    %12 = arith.mulf %10, %11 : vector<2x256xf32>
    %cst_8 = arith.constant dense<0.000000e+00> : vector<2xf32>
    %13 = vector.multi_reduction <add>, %12, %cst_8 [1] : vector<2x256xf32> to vector<2xf32>
    %14 = vector.shape_cast %13 : vector<2xf32> to vector<2x1xf32>
    %15 = vector.broadcast %3 : f32 to vector<2x1xf32>
    %16 = arith.addf %14, %15 : vector<2x1xf32>
    %c0_9 = arith.constant 0 : index
    %c0_10 = arith.constant 0 : index
    %17 = vector.load %arg5[%c0_9, %c0_10] : memref<2x1xf32, #tpu.memory_space<vmem>>, vector<2x1xf32>
    tpu.vector_store %arg5[%c0_9, %c0_10], %16 {strides = array<i32>} : memref<2x1xf32, #tpu.memory_space<vmem>>, vector<2x1xf32>,
    return
  }
  func.func @transform_0(%arg0: i32) -> (i32, i32) {
    %c0_i32 = arith.constant 0 : i32
    %c0_i32_0 = arith.constant 0 : i32
    return %arg0, %c0_i32 : i32, i32
  }
  func.func @transform_1(%arg0: i32) -> (i32, i32) {
    %c0_i32 = arith.constant 0 : i32
    %c0_i32_0 = arith.constant 0 : i32
    %c0_i32_1 = arith.constant 0 : i32
    return %c0_i32, %c0_i32_0 : i32, i32
  }
  func.func @transform_2(%arg0: i32) -> (i32, i32) {
    %c0_i32 = arith.constant 0 : i32
    %c0_i32_0 = arith.constant 0 : i32
    %c0_i32_1 = arith.constant 0 : i32
    return %c0_i32, %c0_i32_0 : i32, i32
  }
  func.func @transform_3(%arg0: i32) -> (i32, i32) {
    %c0_i32 = arith.constant 0 : i32
    %c0_i32_0 = arith.constant 0 : i32
    %c0_i32_1 = arith.constant 0 : i32
    return %c0_i32, %c0_i32_0 : i32, i32
  }
  func.func @transform_4(%arg0: i32) -> (i32, i32) {
    %c0_i32 = arith.constant 0 : i32
    %c0_i32_0 = arith.constant 0 : i32
    return %arg0, %c0_i32 : i32, i32
  }
}

</mosaic_0001>

<llo_original>
// kernel: tpu_custom_call.1
$region0: #{tpu_custom_call.1}
  #allocation0 [shape = 'u32[]', space=smem, size = 0x4, offset = 0x4, fixed_abs, tag = 'smem constant byte address 0x4 - core index']
  #allocation1 [shape = 'u32[72,128]{1,0:T(1,128)}', space=vmem, size = 0x9000, scoped, tag = 'internal scratch']
  #allocation2 [shape = 'f32[1,1]{1,0:T(1,128)S(6)}', space=smem, size = 0x200, scoped, tag = 'scoped memory for tpu_custom_call.1']
  %s0 = inlined_call_operand.vmem [shape: f32[2,96], index: 0, kind: input, shape index: {}]
  %s1 = inlined_call_operand.hbm [shape: f32[96,256], index: 1, kind: input, shape index: {}]
  %s2 = inlined_call_operand.hbm [shape: f32[2,256], index: 2, kind: input, shape index: {}]
  %s3 = inlined_call_operand.<no memory space> [shape: f32[1,1], index: 3, kind: input, shape index: {}]
  %s4 = inlined_call_operand.vmem [shape: f32[2,1], index: 4, kind: output, shape index: {}]
  %s5 = sld [smem:[#allocation0]]
  $region34: #{tpu_custom_call.1} parent=0
    _
  %s7 = ssub.s32 1, %s5
  %s8 = scalar_select 0, %s7, %s5
  %9 = sst [smem:[#allocation2]] %s3
  $region1: #{tpu_custom_call.1} parent=0
    #allocation3 [shape = 'u8[98304]{0}', space=vmem, size = 0x18000, scoped, tag = 'input window, operand 1, single buffered']
    #allocation4 [shape = 's32[1]{0}', space=sflag, size = 0x4, scoped, tag = 'scoped memory for tpu_custom_call.1']
    #allocation5 [shape = 'u8[2048]{0}', space=vmem, size = 0x800, scoped, tag = 'input window, operand 2, single buffered']
    #allocation6 [shape = 's32[1]{0}', space=sflag, size = 0x4, scoped, tag = 'scoped memory for tpu_custom_call.1']
    %10 = vsyncpa [#allocation4], 0
    %11 = vsyncpa [#allocation6], 0
    // Predicated region
    $region2: #{tpu_custom_call.1} parent=1 // pred_check
      _
    $region3: #{tpu_custom_call.1} parent=1 // pred_check_branch
      %13 = sbr.rel (0) target = $region5
    $region4: #{tpu_custom_call.1} parent=1 // pred_region
      _
    $region5: #{tpu_custom_call.1} parent=1 // pred_fallthru
      _
    // Predicated region
    $region6: #{tpu_custom_call.1} parent=1 // pred_check
      _
    $region7: #{tpu_custom_call.1} parent=1 // pred_check_branch
      %15 = sbr.rel (0) target = $region9
    $region8: #{tpu_custom_call.1} parent=1 // pred_region
      %17 = vsyncadd [#allocation4], 0
      %s18 = sshll.u32 %s1, 4
      %s19 = int_to_ptr.hbm [resolvable:$true] %s18
      %s20 = sshll.u32 [#allocation3], 4
      %s21 = int_to_ptr.vmem [resolvable:$true] %s20
      %26 = dma.hbm_to_vmem [thread:$0]  %s19, 3072, %s21, [#allocation4], 256, 256, 16
    $region9: #{tpu_custom_call.1} parent=1 // pred_fallthru
      _
    // Predicated region
    $region10: #{tpu_custom_call.1} parent=1 // pred_check
      _
    $region11: #{tpu_custom_call.1} parent=1 // pred_check_branch
      %28 = sbr.rel (0) target = $region13
    $region12: #{tpu_custom_call.1} parent=1 // pred_region
      %30 = vsyncadd [#allocation6], 0
      %s32 = sshll.u32 %s2, 4
      %s33 = int_to_ptr.hbm [resolvable:$true] %s32
      %s34 = sshll.u32 [#allocation5], 4
      %s35 = int_to_ptr.vmem [resolvable:$true] %s34
      %37 = dma.hbm_to_vmem [thread:$0]  %s33, 64, %s35, [#allocation6]
    $region13: #{tpu_custom_call.1} parent=1 // pred_fallthru
      _
    // Predicated region
    $region14: #{tpu_custom_call.1} parent=1 // pred_check
      _
    $region15: #{tpu_custom_call.1} parent=1 // pred_check_branch
      %39 = sbr.rel (0) target = $region17
    $region16: #{tpu_custom_call.1} parent=1 // pred_region
      _
    $region17: #{tpu_custom_call.1} parent=1 // pred_fallthru
      _
    // Predicated region
    $region18: #{tpu_custom_call.1} parent=1 // pred_check
      _
    $region19: #{tpu_custom_call.1} parent=1 // pred_check_branch
      %41 = sbr.rel (0) target = $region21
    $region20: #{tpu_custom_call.1} parent=1 // pred_region
      %43 = dma.done [#allocation4], 3072
    $region21: #{tpu_custom_call.1} parent=1 // pred_fallthru
      _
    // Predicated region
    $region22: #{tpu_custom_call.1} parent=1 // pred_check
      _
    $region23: #{tpu_custom_call.1} parent=1 // pred_check_branch
      %45 = sbr.rel (0) target = $region25
    $region24: #{tpu_custom_call.1} parent=1 // pred_region
      %47 = dma.done [#allocation6], 64
    $region25: #{tpu_custom_call.1} parent=1 // pred_fallthru
      _
    %v48 = vld [vmem:[#allocation5] sm:$0xf]
    %s49 = sld [smem:[#allocation2]]
    %v50 = vld [vmem:[%s0] sm:$0x3]
    %v51 = vld [vmem:[#allocation3] sm:$0xff]
    %v52 = vld [vmem:[#allocation3 + $0x8] sm:$0xff]
    %v53 = vld [vmem:[#allocation3 + $0x10] sm:$0xff]
    %v54 = vld [vmem:[#allocation3 + $0x18] sm:$0xff]
    %v55 = vld [vmem:[#allocation3 + $0x20] sm:$0xff]
    %v56 = vld [vmem:[#allocation3 + $0x28] sm:$0xff]
    %v57 = vld [vmem:[#allocation3 + $0x30] sm:$0xff]
    %v58 = vld [vmem:[#allocation3 + $0x38] sm:$0xff]
    %v59 = vld [vmem:[#allocation3 + $0x40] sm:$0xff]
    %v60 = vld [vmem:[#allocation3 + $0x48] sm:$0xff]
    %v61 = vld [vmem:[#allocation3 + $0x50] sm:$0xff]
    %v62 = vld [vmem:[#allocation3 + $0x58] sm:$0xff]
    %v63 = vld [vmem:[#allocation3 + $0x60] sm:$0xff]
    %v64 = vld [vmem:[#allocation3 + $0x68] sm:$0xff]
    %v65 = vld [vmem:[#allocation3 + $0x70] sm:$0xff]
    %v66 = vld [vmem:[#allocation3 + $0x78] sm:$0xff]
    %v67 = vld [vmem:[#allocation3 + $0x80] sm:$0xff]
    %v68 = vld [vmem:[#allocation3 + $0x88] sm:$0xff]
    %v69 = vld [vmem:[#allocation3 + $0x90] sm:$0xff]
    %v70 = vld [vmem:[#allocation3 + $0x98] sm:$0xff]
    %v71 = vld [vmem:[#allocation3 + $0xa0] sm:$0xff]
    %v72 = vld [vmem:[#allocation3 + $0xa8] sm:$0xff]
    %v73 = vld [vmem:[#allocation3 + $0xb0] sm:$0xff]
    %v74 = vld [vmem:[#allocation3 + $0xb8] sm:$0xff]
    %v76 = vperm.slane %v48, 0
    %v77 = vperm.slane %v48, 2
    %v80 = vperm.slane %v76, 0
    %v81 = vperm.slane %v77, 0
    %vm82 = vcmask 785408
    %v84 = vsel %vm82, %v50, 0
    %86 = vmatpush.msra.mxu0 0.0
    %87 = vmatpush.msra.mxu0 0.0
    %88 = vmatpush.msra.mxu0 0.0
    %89 = vmatpush.msra.mxu0 0.0
    %90 = vmatpush.msra.mxu0 %v73
    %91 = vmatpush.msra.mxu0 %v71
    %92 = vmatpush.msra.mxu0 %v69
    %93 = vmatpush.msra.mxu0 %v67
    %94 = vmatpush.msra.mxu0 %v65
    %95 = vmatpush.msra.mxu0 %v63
    %96 = vmatpush.msra.mxu0 %v61
    %97 = vmatpush.msra.mxu0 %v59
    %98 = vmatpush.msra.mxu0 %v57
    %99 = vmatpush.msra.mxu0 %v55
    %100 = vmatpush.msra.mxu0 %v53
    %101 = vmatpush.msra.mxu0 %v51
    %102 = vmatmul.f32.gmra.mxu0 %v84
    %v103 = vpop.f32.mrf.mxu0
    %v104 = vadd.f32 %v80, %v103
    %105 = vdwg.mxu0
    %106 = vmatpush.msra.mxu0 0.0
    %107 = vmatpush.msra.mxu0 0.0
    %108 = vmatpush.msra.mxu0 0.0
    %109 = vmatpush.msra.mxu0 0.0
    %110 = vmatpush.msra.mxu0 %v74
    %111 = vmatpush.msra.mxu0 %v72
    %112 = vmatpush.msra.mxu0 %v70
    %113 = vmatpush.msra.mxu0 %v68
    %114 = vmatpush.msra.mxu0 %v66
    %115 = vmatpush.msra.mxu0 %v64
    %116 = vmatpush.msra.mxu0 %v62
    %117 = vmatpush.msra.mxu0 %v60
    %118 = vmatpush.msra.mxu0 %v58
    %119 = vmatpush.msra.mxu0 %v56
    %120 = vmatpush.msra.mxu0 %v54
    %121 = vmatpush.msra.mxu0 %v52
    %122 = vmatmul.f32.gmra.mxu0 %v84
    %v123 = vpop.f32.mrf.mxu0
    %v124 = vadd.f32 %v81, %v123
    %125 = vdwg.mxu0
    %v126 = vmax.f32 %v104, 0.0
    %v127 = vmax.f32 %v124, 0.0
    %v128 = vperm.slane %v48, 1
    %v129 = vperm.slane %v48, 3
    %v132 = vperm.slane %v128, 1
    %v133 = vperm.slane %v129, 1
    %v134 = vmul.f32 %v126, %v132
    %v135 = vmul.f32 %v127, %v133
    %vm136 = vcmask 1041408
    %v137 = vsel %vm136, %v134, 0.0
    %v138 = vsel %vm136, %v135, 0.0
    %v139 = vadd.f32 %v137, %v138
    %140 = vadd.xlane.f32.xlu0 %v139
    %v141 = vpop.xlane.xlu0 %140
    %v142 = vstv %s49
    %v143 = vadd.f32 %v141, %v142
    %vm144 = vcmask 1024
    %145 = vst.msk [vmem:[%s4] sm:$0x3] %vm144, %v143
    // Predicated region
    $region26: #{tpu_custom_call.1} parent=1 // pred_check
      _
    $region27: #{tpu_custom_call.1} parent=1 // pred_check_branch
      %147 = sbr.rel (0) target = $region29
    $region28: #{tpu_custom_call.1} parent=1 // pred_region
      _
    $region29: #{tpu_custom_call.1} parent=1 // pred_fallthru
      _
    // Predicated region
    $region30: #{tpu_custom_call.1} parent=1 // pred_check
      _
    $region31: #{tpu_custom_call.1} parent=1 // pred_check_branch
      %149 = sbr.rel (0) target = $region33
    $region32: #{tpu_custom_call.1} parent=1 // pred_region
      _
    $region33: #{tpu_custom_call.1} parent=1 // pred_fallthru
      _
    %150 = vsyncpa [#allocation4], 1
    %151 = vsyncpa [#allocation6], 1

</llo_original>
